<compile_context>
chip_gen: v5e
topology: v5e:2x2
jax: 0.10.0
libtpu: 0.0.40
codegen_flags: <defaults>
</compile_context>

<pallas_src>
import jax
import jax.numpy as jnp
from jax.experimental import pallas as pl
from jax.experimental.pallas import tpu as pltpu

# SELU constants (match torch.nn.SELU)
_SELU_ALPHA = 1.6732632423543772
_SELU_SCALE = 1.0507009873554805

_LANE = 128
_SUBLANE = 8


def _round_up(n, m):
    return ((n + m - 1) // m) * m


def _selu_kernel(x):
    # Clamp so the unselected exp branch stays finite (no inf / NaN-grad hazard).
    neg = _SELU_ALPHA * (jnp.exp(jnp.minimum(x, 0.0)) - 1.0)
    return _SELU_SCALE * jnp.where(x > 0.0, x, neg)


def critic_kernel(xidx_ref, w1f_ref, b1_ref, w2_ref, b2_ref, w3_ref, b3_ref,
                  out_ref):
    """Fused embedding gather + 3-layer SELU MLP for one batch tile.

    xidx_ref : (block_b, 1) int32   state indices
    w1f_ref  : (S_pad, H)  f32      fused table: emb @ w1, zero-padded rows
    b1_ref   : (1, H)
    w2_ref   : (H, H)        b2_ref : (1, H)
    w3_ref   : (H, A)        b3_ref : (1, A)
    out_ref  : (block_b, A) f32
    """
    block_b = xidx_ref.shape[0]
    s_pad = w1f_ref.shape[0]

    # ---- embedding gather fused with layer 1 as a single MXU matmul.
    idx = xidx_ref[...]                                              # (bb, 1) i32
    state_iota = jax.lax.broadcasted_iota(jnp.int32, (block_b, s_pad), 1)
    onehot = (state_iota == idx).astype(jnp.float32)                 # (bb, S_pad)
    h1 = _selu_kernel(
        jnp.dot(onehot, w1f_ref[...], preferred_element_type=jnp.float32)
        + b1_ref[...])                                               # (bb, H)

    # ---- layer 2: H x H matmul on the MXU, f32 accumulation.
    h2 = _selu_kernel(
        jnp.dot(h1, w2_ref[...], preferred_element_type=jnp.float32)
        + b2_ref[...])                                               # (bb, H)

    # ---- layer 3: narrow output (action_dim lanes), stored directly.
    y = jnp.dot(h2, w3_ref[...], preferred_element_type=jnp.float32) + b3_ref[...]
    out_ref[...] = y.astype(out_ref.dtype)                           # (bb, A)


def make_critic_params(key, action_dim, hidden_dim, max_states=100, embed_dim=1):
    """Deterministic synthetic parameters (shapes match the PyTorch module)."""
    ks = jax.random.split(key, 7)

    def lin(kw, fan_in, fan_out):
        scale = 1.0 / jnp.sqrt(jnp.float32(fan_in))
        return jax.random.uniform(kw, (fan_in, fan_out), jnp.float32, -scale, scale)

    return {
        "emb": jax.random.normal(ks[0], (max_states, embed_dim), jnp.float32),
        "w1": lin(ks[1], embed_dim, hidden_dim),
        "b1": jax.random.uniform(ks[2], (1, hidden_dim), jnp.float32, -0.1, 0.1),
        "w2": lin(ks[3], hidden_dim, hidden_dim),
        "b2": jax.random.uniform(ks[4], (1, hidden_dim), jnp.float32, -0.1, 0.1),
        "w3": lin(ks[5], hidden_dim, action_dim),
        "b3": jax.random.uniform(ks[6], (1, action_dim), jnp.float32, -0.1, 0.1),
    }


def critic_forward(params, x_idx, *, block_b_max=2048, min_grid_steps=2):
    """x_idx: int32 (B, 1) state indices.  Returns (B, action_dim) f32."""
    max_states, embed_dim = params["emb"].shape
    assert embed_dim == 1, "fused-gather kernel assumes the module default embed_dim=1"
    action_dim = params["w3"].shape[1]

    B = x_idx.shape[0]
    s_pad = _round_up(max_states, _LANE)          # lane-aligned one-hot width

    # Balanced batch tiling: ~equal blocks (no near-boundary 2x padding waste)
    # and >= min_grid_steps steps whenever B > 8 so the "parallel" axis shards
    # across both TensorCores on v7x.
    n_steps = max(pl.cdiv(B, block_b_max),
                  min_grid_steps if B > _SUBLANE else 1)
    block_b = _round_up(pl.cdiv(B, n_steps), _SUBLANE)
    b_pad = block_b * n_steps

    x = x_idx.reshape(B, 1).astype(jnp.int32)
    if b_pad != B:
        x = jnp.pad(x, ((0, b_pad - B), (0, 0)))  # padded rows gather state 0

    # Fold the embedding table into layer 1.  emb @ w1 is an outer product;
    # the in-kernel one-hot contraction reproduces emb[idx] * w1 exactly.
    fused_w1 = params["emb"] @ params["w1"]                      # (S, H)
    fused_w1 = jnp.pad(fused_w1, ((0, s_pad - max_states), (0, 0)))

    # Untiled VMEM-resident specs: single copy, no double-buffering, stays
    # resident across all batch-grid steps.
    resident = pl.BlockSpec(memory_space=pltpu.MemorySpace.VMEM)

    out = pl.pallas_call(
        critic_kernel,
        out_shape=jax.ShapeDtypeStruct((b_pad, action_dim), jnp.float32),
        grid=(n_steps,),
        in_specs=[
            pl.BlockSpec((block_b, 1), lambda i: (i, 0)),   # indices (pipelined)
            resident,                                       # fused emb@w1 table
            resident,                                       # b1
            resident, resident,                             # w2, b2
            resident, resident,                             # w3, b3
        ],
        out_specs=pl.BlockSpec((block_b, action_dim), lambda i: (i, 0)),
        compiler_params=pltpu.CompilerParams(
            dimension_semantics=("parallel",)),
    )(x, fused_w1, params["b1"], params["w2"], params["b2"],
      params["w3"], params["b3"])

    return out if b_pad == B else out[:B]


def _selu_ref(x):
    return _SELU_SCALE * jnp.where(
        x > 0.0, x, _SELU_ALPHA * jnp.expm1(jnp.minimum(x, 0.0)))


def critic_forward_ref(params, x_idx):
    """Pure-JAX reference (torch semantics: embedding gather + SELU MLP)."""
    hi = jax.lax.Precision.HIGHEST
    emb = params["emb"][x_idx[:, 0]]
    h1 = _selu_ref(jnp.dot(emb, params["w1"], precision=hi) + params["b1"])
    h2 = _selu_ref(jnp.dot(h1, params["w2"], precision=hi) + params["b2"])
    return jnp.dot(h2, params["w3"], precision=hi) + params["b3"]


if __name__ == "__main__":
    key = jax.random.PRNGKey(0)
    k_params, k_x1, k_x2 = jax.random.split(key, 3)

    # hidden_dim chosen as a multiple of 128 (full lane utilization).
    action_dim, hidden_dim, max_states, embed_dim = 4, 128, 100, 1

    params = make_critic_params(k_params, action_dim, hidden_dim,
                                max_states=max_states, embed_dim=embed_dim)

    # Small batch (single grid step).
    batch = 8
    x_idx = jax.random.randint(k_x1, (batch, 1), 0, max_states, dtype=jnp.int32)
    out = jax.block_until_ready(critic_forward(params, x_idx))
    ref = critic_forward_ref(params, x_idx)
    assert out.shape == (batch, action_dim)
    assert jnp.allclose(out, ref, atol=1e-5, rtol=1e-5)

    # Larger batch: exercises the balanced multi-step grid + batch padding path.
    batch2 = 300
    x_idx2 = jax.random.randint(k_x2, (batch2, 1), 0, max_states, dtype=jnp.int32)
    out2 = jax.block_until_ready(critic_forward(params, x_idx2))
    ref2 = critic_forward_ref(params, x_idx2)
    assert out2.shape == (batch2, action_dim)
    assert jnp.allclose(out2, ref2, atol=1e-5, rtol=1e-5)

    print("KERNEL_OK")
</pallas_src>

<mosaic_0001>
module attributes {stable_mosaic.version = 11 : i64} {
  func.func @critic_kernel(%arg0: i32, %arg1: memref<8x1xi32, #tpu.memory_space<vmem>>, %arg2: memref<128x128xf32, #tpu.memory_space<vmem>>, %arg3: memref<1x128xf32, #tpu.memory_space<vmem>>, %arg4: memref<128x128xf32, #tpu.memory_space<vmem>>, %arg5: memref<1x128xf32, #tpu.memory_space<vmem>>, %arg6: memref<128x4xf32, #tpu.memory_space<vmem>>, %arg7: memref<1x4xf32, #tpu.memory_space<vmem>>, %arg8: memref<8x4xf32, #tpu.memory_space<vmem>>) attributes {dimension_semantics = [#tpu.dimension_semantics<parallel>], iteration_bounds = array<i64: 1>, scalar_prefetch = 0 : i64, scratch_operands = 0 : i64, tpu.core_type = #tpu.core_type<tc>, window_params = [{transform_indices = @transform_0, window_bounds = array<i64: 8, 1>}, {pipeline_mode = #tpu.pipeline_mode<synchronous>, transform_indices = @transform_1, window_bounds = array<i64: 128, 128>}, {pipeline_mode = #tpu.pipeline_mode<synchronous>, transform_indices = @transform_2, window_bounds = array<i64: 1, 128>}, {pipeline_mode = #tpu.pipeline_mode<synchronous>, transform_indices = @transform_3, window_bounds = array<i64: 128, 128>}, {pipeline_mode = #tpu.pipeline_mode<synchronous>, transform_indices = @transform_4, window_bounds = array<i64: 1, 128>}, {pipeline_mode = #tpu.pipeline_mode<synchronous>, transform_indices = @transform_5, window_bounds = array<i64: 128, 4>}, {pipeline_mode = #tpu.pipeline_mode<synchronous>, transform_indices = @transform_6, window_bounds = array<i64: 1, 4>}, {transform_indices = @transform_7, window_bounds = array<i64: 8, 4>}]} {
    %c0 = arith.constant 0 : index
    %c0_0 = arith.constant 0 : index
    %0 = vector.load %arg1[%c0, %c0_0] : memref<8x1xi32, #tpu.memory_space<vmem>>, vector<8x1xi32>
    %1 = tpu.iota {dimensions = array<i32: 1>} : vector<8x128xi32>
    %2 = vector.broadcast %0 : vector<8x1xi32> to vector<8x128xi32>
    %3 = arith.cmpi eq, %1, %2 : vector<8x128xi32>
    %4 = arith.extui %3 : vector<8x128xi1> to vector<8x128xi32>
    %5 = arith.sitofp %4 : vector<8x128xi32> to vector<8x128xf32>
    %c0_1 = arith.constant 0 : index
    %c0_2 = arith.constant 0 : index
    %6 = vector.load %arg2[%c0_1, %c0_2] : memref<128x128xf32, #tpu.memory_space<vmem>>, vector<128x128xf32>
    %cst = arith.constant dense<0.000000e+00> : vector<8x128xf32>
    %7 = tpu.matmul %5, %6, %cst {dimension_numbers = #tpu.dot_dimension_numbers<[1], [0], [0], [1], [0, 0, 1, 1], [], []>} : vector<8x128xf32>, vector<128x128xf32>, vector<8x128xf32> -> vector<8x128xf32>
    %c0_3 = arith.constant 0 : index
    %c0_4 = arith.constant 0 : index
    %8 = vector.load %arg3[%c0_3, %c0_4] : memref<1x128xf32, #tpu.memory_space<vmem>>, vector<1x128xf32>
    %9 = vector.broadcast %8 : vector<1x128xf32> to vector<8x128xf32>
    %10 = arith.addf %7, %9 : vector<8x128xf32>
    %cst_5 = arith.constant 0.000000e+00 : f32
    %11 = vector.broadcast %cst_5 : f32 to vector<8x128xf32>
    %12 = arith.minimumf %10, %11 : vector<8x128xf32>
    %13 = math.exp %12 : vector<8x128xf32>
    %cst_6 = arith.constant 1.000000e+00 : f32
    %14 = vector.broadcast %cst_6 : f32 to vector<8x128xf32>
    %15 = arith.subf %13, %14 : vector<8x128xf32>
    %cst_7 = arith.constant 1.67326319 : f32
    %16 = vector.broadcast %cst_7 : f32 to vector<8x128xf32>
    %17 = arith.mulf %16, %15 : vector<8x128xf32>
    %cst_8 = arith.constant 0.000000e+00 : f32
    %18 = vector.broadcast %cst_8 : f32 to vector<8x128xf32>
    %19 = arith.cmpf ogt, %10, %18 : vector<8x128xf32>
    %20 = arith.select %19, %10, %17 : vector<8x128xi1>, vector<8x128xf32>
    %cst_9 = arith.constant 1.05070102 : f32
    %21 = vector.broadcast %cst_9 : f32 to vector<8x128xf32>
    %22 = arith.mulf %21, %20 : vector<8x128xf32>
    %c0_10 = arith.constant 0 : index
    %c0_11 = arith.constant 0 : index
    %23 = vector.load %arg4[%c0_10, %c0_11] : memref<128x128xf32, #tpu.memory_space<vmem>>, vector<128x128xf32>
    %cst_12 = arith.constant dense<0.000000e+00> : vector<8x128xf32>
    %24 = tpu.matmul %22, %23, %cst_12 {dimension_numbers = #tpu.dot_dimension_numbers<[1], [0], [0], [1], [0, 0, 1, 1], [], []>} : vector<8x128xf32>, vector<128x128xf32>, vector<8x128xf32> -> vector<8x128xf32>
    %c0_13 = arith.constant 0 : index
    %c0_14 = arith.constant 0 : index
    %25 = vector.load %arg5[%c0_13, %c0_14] : memref<1x128xf32, #tpu.memory_space<vmem>>, vector<1x128xf32>
    %26 = vector.broadcast %25 : vector<1x128xf32> to vector<8x128xf32>
    %27 = arith.addf %24, %26 : vector<8x128xf32>
    %cst_15 = arith.constant 0.000000e+00 : f32
    %28 = vector.broadcast %cst_15 : f32 to vector<8x128xf32>
    %29 = arith.minimumf %27, %28 : vector<8x128xf32>
    %30 = math.exp %29 : vector<8x128xf32>
    %cst_16 = arith.constant 1.000000e+00 : f32
    %31 = vector.broadcast %cst_16 : f32 to vector<8x128xf32>
    %32 = arith.subf %30, %31 : vector<8x128xf32>
    %cst_17 = arith.constant 1.67326319 : f32
    %33 = vector.broadcast %cst_17 : f32 to vector<8x128xf32>
    %34 = arith.mulf %33, %32 : vector<8x128xf32>
    %cst_18 = arith.constant 0.000000e+00 : f32
    %35 = vector.broadcast %cst_18 : f32 to vector<8x128xf32>
    %36 = arith.cmpf ogt, %27, %35 : vector<8x128xf32>
    %37 = arith.select %36, %27, %34 : vector<8x128xi1>, vector<8x128xf32>
    %cst_19 = arith.constant 1.05070102 : f32
    %38 = vector.broadcast %cst_19 : f32 to vector<8x128xf32>
    %39 = arith.mulf %38, %37 : vector<8x128xf32>
    %c0_20 = arith.constant 0 : index
    %c0_21 = arith.constant 0 : index
    %40 = vector.load %arg6[%c0_20, %c0_21] : memref<128x4xf32, #tpu.memory_space<vmem>>, vector<128x4xf32>
    %cst_22 = arith.constant dense<0.000000e+00> : vector<8x4xf32>
    %41 = tpu.matmul %39, %40, %cst_22 {dimension_numbers = #tpu.dot_dimension_numbers<[1], [0], [0], [1], [0, 0, 1, 1], [], []>} : vector<8x128xf32>, vector<128x4xf32>, vector<8x4xf32> -> vector<8x4xf32>
    %c0_23 = arith.constant 0 : index
    %c0_24 = arith.constant 0 : index
    %42 = vector.load %arg7[%c0_23, %c0_24] : memref<1x4xf32, #tpu.memory_space<vmem>>, vector<1x4xf32>
    %43 = vector.broadcast %42 : vector<1x4xf32> to vector<8x4xf32>
    %44 = arith.addf %41, %43 : vector<8x4xf32>
    %c0_25 = arith.constant 0 : index
    %c0_26 = arith.constant 0 : index
    %45 = vector.load %arg8[%c0_25, %c0_26] : memref<8x4xf32, #tpu.memory_space<vmem>>, vector<8x4xf32>
    tpu.vector_store %arg8[%c0_25, %c0_26], %44 {strides = array<i32>} : memref<8x4xf32, #tpu.memory_space<vmem>>, vector<8x4xf32>,
    return
  }
  func.func @transform_0(%arg0: i32) -> (i32, i32) {
    %c0_i32 = arith.constant 0 : i32
    %c0_i32_0 = arith.constant 0 : i32
    return %arg0, %c0_i32 : i32, i32
  }
  func.func @transform_1(%arg0: i32) -> (i32, i32) {
    %c0_i32 = arith.constant 0 : i32
    %c0_i32_0 = arith.constant 0 : i32
    %c0_i32_1 = arith.constant 0 : i32
    return %c0_i32, %c0_i32_0 : i32, i32
  }
  func.func @transform_2(%arg0: i32) -> (i32, i32) {
    %c0_i32 = arith.constant 0 : i32
    %c0_i32_0 = arith.constant 0 : i32
    %c0_i32_1 = arith.constant 0 : i32
    return %c0_i32, %c0_i32_0 : i32, i32
  }
  func.func @transform_3(%arg0: i32) -> (i32, i32) {
    %c0_i32 = arith.constant 0 : i32
    %c0_i32_0 = arith.constant 0 : i32
    %c0_i32_1 = arith.constant 0 : i32
    return %c0_i32, %c0_i32_0 : i32, i32
  }
  func.func @transform_4(%arg0: i32) -> (i32, i32) {
    %c0_i32 = arith.constant 0 : i32
    %c0_i32_0 = arith.constant 0 : i32
    %c0_i32_1 = arith.constant 0 : i32
    return %c0_i32, %c0_i32_0 : i32, i32
  }
  func.func @transform_5(%arg0: i32) -> (i32, i32) {
    %c0_i32 = arith.constant 0 : i32
    %c0_i32_0 = arith.constant 0 : i32
    %c0_i32_1 = arith.constant 0 : i32
    return %c0_i32, %c0_i32_0 : i32, i32
  }
  func.func @transform_6(%arg0: i32) -> (i32, i32) {
    %c0_i32 = arith.constant 0 : i32
    %c0_i32_0 = arith.constant 0 : i32
    %c0_i32_1 = arith.constant 0 : i32
    return %c0_i32, %c0_i32_0 : i32, i32
  }
  func.func @transform_7(%arg0: i32) -> (i32, i32) {
    %c0_i32 = arith.constant 0 : i32
    %c0_i32_0 = arith.constant 0 : i32
    return %arg0, %c0_i32 : i32, i32
  }
}

</mosaic_0001>

<llo_original>
// kernel: tpu_custom_call.1
$region0: #{tpu_custom_call.1}
  #allocation0 [shape = 'u32[]', space=smem, size = 0x4, offset = 0x4, fixed_abs, tag = 'smem constant byte address 0x4 - core index']
  #allocation1 [shape = 'u32[72,128]{1,0:T(1,128)}', space=vmem, size = 0x9000, scoped, tag = 'internal scratch']
  %s0 = inlined_call_operand.vmem [shape: s32[8,1], index: 0, kind: input, shape index: {}]
  %s1 = inlined_call_operand.vmem [shape: f32[128,128], index: 1, kind: input, shape index: {}]
  %s2 = inlined_call_operand.vmem [shape: f32[1,128], index: 2, kind: input, shape index: {}]
  %s3 = inlined_call_operand.hbm [shape: f32[128,128], index: 3, kind: input, shape index: {}]
  %s4 = inlined_call_operand.vmem [shape: f32[1,128], index: 4, kind: input, shape index: {}]
  %s5 = inlined_call_operand.vmem [shape: f32[128,4], index: 5, kind: input, shape index: {}]
  %s6 = inlined_call_operand.vmem [shape: f32[1,4], index: 6, kind: input, shape index: {}]
  %s7 = inlined_call_operand.vmem [shape: f32[8,4], index: 7, kind: output, shape index: {}]
  %s8 = sld [smem:[#allocation0]]
  $region42: #{tpu_custom_call.1} parent=0
    _
  %s10 = ssub.s32 1, %s8
  %s11 = scalar_select 0, %s10, %s8
  $region1: #{tpu_custom_call.1} parent=0
    #allocation2 [shape = 'u8[65536]{0}', space=vmem, size = 0x10000, scoped, tag = 'input window, operand 3, single buffered']
    #allocation3 [shape = 's32[1]{0}', space=sflag, size = 0x4, scoped, tag = 'scoped memory for tpu_custom_call.1']
    %12 = vsyncpa [#allocation3], 0
    // Predicated region
    $region2: #{tpu_custom_call.1} parent=1 // pred_check
      _
    $region3: #{tpu_custom_call.1} parent=1 // pred_check_branch
      %14 = sbr.rel (0) target = $region5
    $region4: #{tpu_custom_call.1} parent=1 // pred_region
      _
    $region5: #{tpu_custom_call.1} parent=1 // pred_fallthru
      _
    // Predicated region
    $region6: #{tpu_custom_call.1} parent=1 // pred_check
      _
    $region7: #{tpu_custom_call.1} parent=1 // pred_check_branch
      %16 = sbr.rel (0) target = $region9
    $region8: #{tpu_custom_call.1} parent=1 // pred_region
      _
    $region9: #{tpu_custom_call.1} parent=1 // pred_fallthru
      _
    // Predicated region
    $region10: #{tpu_custom_call.1} parent=1 // pred_check
      _
    $region11: #{tpu_custom_call.1} parent=1 // pred_check_branch
      %18 = sbr.rel (0) target = $region13
    $region12: #{tpu_custom_call.1} parent=1 // pred_region
      _
    $region13: #{tpu_custom_call.1} parent=1 // pred_fallthru
      _
    // Predicated region
    $region14: #{tpu_custom_call.1} parent=1 // pred_check
      _
    $region15: #{tpu_custom_call.1} parent=1 // pred_check_branch
      %20 = sbr.rel (0) target = $region17
    $region16: #{tpu_custom_call.1} parent=1 // pred_region
      %22 = vsyncadd [#allocation3], 0
      %s23 = sshll.u32 %s3, 4
      %s24 = int_to_ptr.hbm [resolvable:$true] %s23
      %s25 = sshll.u32 [#allocation2], 4
      %s26 = int_to_ptr.vmem [resolvable:$true] %s25
      %31 = dma.hbm_to_vmem [thread:$0]  %s24, 2048, %s26, [#allocation3], 128, 128, 8
    $region17: #{tpu_custom_call.1} parent=1 // pred_fallthru
      _
    // Predicated region
    $region18: #{tpu_custom_call.1} parent=1 // pred_check
      _
    $region19: #{tpu_custom_call.1} parent=1 // pred_check_branch
      %33 = sbr.rel (0) target = $region21
    $region20: #{tpu_custom_call.1} parent=1 // pred_region
      _
    $region21: #{tpu_custom_call.1} parent=1 // pred_fallthru
      _
    // Predicated region
    $region22: #{tpu_custom_call.1} parent=1 // pred_check
      _
    $region23: #{tpu_custom_call.1} parent=1 // pred_check_branch
      %35 = sbr.rel (0) target = $region25
    $region24: #{tpu_custom_call.1} parent=1 // pred_region
      _
    $region25: #{tpu_custom_call.1} parent=1 // pred_fallthru
      _
    // Predicated region
    $region26: #{tpu_custom_call.1} parent=1 // pred_check
      _
    $region27: #{tpu_custom_call.1} parent=1 // pred_check_branch
      %37 = sbr.rel (0) target = $region29
    $region28: #{tpu_custom_call.1} parent=1 // pred_region
      _
    $region29: #{tpu_custom_call.1} parent=1 // pred_fallthru
      _
    // Predicated region
    $region30: #{tpu_custom_call.1} parent=1 // pred_check
      _
    $region31: #{tpu_custom_call.1} parent=1 // pred_check_branch
      %39 = sbr.rel (0) target = $region33
    $region32: #{tpu_custom_call.1} parent=1 // pred_region
      %41 = dma.done [#allocation3], 2048
    $region33: #{tpu_custom_call.1} parent=1 // pred_fallthru
      _
    %v42 = vld [vmem:[%s0] sm:$0xff]
    %v43 = vlaneseq
    %v44 = vand.u32 %v43, 127
    %45 = vset.pattern.permute.xlu0 0
    %46 = vperm.xlu0 %45, %v42
    %v47 = vpop.permute.xlu0 %46
    %vm48 = vcmp.eq.s32.totalorder %v44, %v47
    %v49 = vsel %vm48, 1, 0
    %v50 = vcvt.s32.f32 %v49
    %v51 = vld [vmem:[%s1] sm:$0xff]
    %v52 = vld [vmem:[%s1 + $0x8] sm:$0xff]
    %v53 = vld [vmem:[%s1 + $0x10] sm:$0xff]
    %v54 = vld [vmem:[%s1 + $0x18] sm:$0xff]
    %v55 = vld [vmem:[%s1 + $0x20] sm:$0xff]
    %v56 = vld [vmem:[%s1 + $0x28] sm:$0xff]
    %v57 = vld [vmem:[%s1 + $0x30] sm:$0xff]
    %v58 = vld [vmem:[%s1 + $0x38] sm:$0xff]
    %v59 = vld [vmem:[%s1 + $0x40] sm:$0xff]
    %v60 = vld [vmem:[%s1 + $0x48] sm:$0xff]
    %v61 = vld [vmem:[%s1 + $0x50] sm:$0xff]
    %v62 = vld [vmem:[%s1 + $0x58] sm:$0xff]
    %v63 = vld [vmem:[%s1 + $0x60] sm:$0xff]
    %v64 = vld [vmem:[%s1 + $0x68] sm:$0xff]
    %v65 = vld [vmem:[%s1 + $0x70] sm:$0xff]
    %v66 = vld [vmem:[%s1 + $0x78] sm:$0xff]
    %v67 = vld [vmem:[%s2] sm:$0x1]
    %v69 = vperm.slane %v67, 0
    %71 = vmatpush.msra.mxu0 %v66
    %72 = vmatpush.msra.mxu0 %v65
    %73 = vmatpush.msra.mxu0 %v64
    %74 = vmatpush.msra.mxu0 %v63
    %75 = vmatpush.msra.mxu0 %v62
    %76 = vmatpush.msra.mxu0 %v61
    %77 = vmatpush.msra.mxu0 %v60
    %78 = vmatpush.msra.mxu0 %v59
    %79 = vmatpush.msra.mxu0 %v58
    %80 = vmatpush.msra.mxu0 %v57
    %81 = vmatpush.msra.mxu0 %v56
    %82 = vmatpush.msra.mxu0 %v55
    %83 = vmatpush.msra.mxu0 %v54
    %84 = vmatpush.msra.mxu0 %v53
    %85 = vmatpush.msra.mxu0 %v52
    %86 = vmatpush.msra.mxu0 %v51
    %87 = vmatmul.f32.gmra.mxu0 %v50
    %v88 = vpop.f32.mrf.mxu0
    %v89 = vadd.f32 %v69, %v88
    %90 = vdwg.mxu0
    %v91 = vmin.f32 %v89, 0.0
    %v92 = vmul.f32 %v91, 1.442695
    %v93 = vpow.pop %v92
    %v94 = vsub.f32 %v93, 1.0
    %v95 = vmul.f32 %v94, 1.6732632
    %vm96 = vcmp.gt.f32.partialorder %v89, 0.0
    %v97 = vsel %vm96, %v89, %v95
    %v98 = vmul.f32 %v97, 1.050701
    %v99 = vld [vmem:[#allocation2] sm:$0xff]
    %v100 = vld [vmem:[#allocation2 + $0x8] sm:$0xff]
    %v101 = vld [vmem:[#allocation2 + $0x10] sm:$0xff]
    %v102 = vld [vmem:[#allocation2 + $0x18] sm:$0xff]
    %v103 = vld [vmem:[#allocation2 + $0x20] sm:$0xff]
    %v104 = vld [vmem:[#allocation2 + $0x28] sm:$0xff]
    %v105 = vld [vmem:[#allocation2 + $0x30] sm:$0xff]
    %v106 = vld [vmem:[#allocation2 + $0x38] sm:$0xff]
    %v107 = vld [vmem:[#allocation2 + $0x40] sm:$0xff]
    %v108 = vld [vmem:[#allocation2 + $0x48] sm:$0xff]
    %v109 = vld [vmem:[#allocation2 + $0x50] sm:$0xff]
    %v110 = vld [vmem:[#allocation2 + $0x58] sm:$0xff]
    %v111 = vld [vmem:[#allocation2 + $0x60] sm:$0xff]
    %v112 = vld [vmem:[#allocation2 + $0x68] sm:$0xff]
    %v113 = vld [vmem:[#allocation2 + $0x70] sm:$0xff]
    %v114 = vld [vmem:[#allocation2 + $0x78] sm:$0xff]
    %v115 = vld [vmem:[%s4] sm:$0x1]
    %v117 = vperm.slane %v115, 0
    %119 = vmatpush.msra.mxu0 %v114
    %120 = vmatpush.msra.mxu0 %v113
    %121 = vmatpush.msra.mxu0 %v112
    %122 = vmatpush.msra.mxu0 %v111
    %123 = vmatpush.msra.mxu0 %v110
    %124 = vmatpush.msra.mxu0 %v109
    %125 = vmatpush.msra.mxu0 %v108
    %126 = vmatpush.msra.mxu0 %v107
    %127 = vmatpush.msra.mxu0 %v106
    %128 = vmatpush.msra.mxu0 %v105
    %129 = vmatpush.msra.mxu0 %v104
    %130 = vmatpush.msra.mxu0 %v103
    %131 = vmatpush.msra.mxu0 %v102
    %132 = vmatpush.msra.mxu0 %v101
    %133 = vmatpush.msra.mxu0 %v100
    %134 = vmatpush.msra.mxu0 %v99
    %135 = vmatmul.f32.gmra.mxu0 %v98
    %v136 = vpop.f32.mrf.mxu0
    %v137 = vadd.f32 %v117, %v136
    %138 = vdwg.mxu0
    %v139 = vmin.f32 %v137, 0.0
    %v140 = vmul.f32 %v139, 1.442695
    %v141 = vpow.pop %v140
    %v142 = vsub.f32 %v141, 1.0
    %v143 = vmul.f32 %v142, 1.6732632
    %vm144 = vcmp.gt.f32.partialorder %v137, 0.0
    %v145 = vsel %vm144, %v137, %v143
    %v146 = vmul.f32 %v145, 1.050701
    %v147 = vld [vmem:[%s5] sm:$0xff]
    %v148 = vld [vmem:[%s5 + $0x8] sm:$0xff]
    %v149 = vld [vmem:[%s5 + $0x10] sm:$0xff]
    %v150 = vld [vmem:[%s5 + $0x18] sm:$0xff]
    %v151 = vld [vmem:[%s5 + $0x20] sm:$0xff]
    %v152 = vld [vmem:[%s5 + $0x28] sm:$0xff]
    %v153 = vld [vmem:[%s5 + $0x30] sm:$0xff]
    %v154 = vld [vmem:[%s5 + $0x38] sm:$0xff]
    %v155 = vld [vmem:[%s5 + $0x40] sm:$0xff]
    %v156 = vld [vmem:[%s5 + $0x48] sm:$0xff]
    %v157 = vld [vmem:[%s5 + $0x50] sm:$0xff]
    %v158 = vld [vmem:[%s5 + $0x58] sm:$0xff]
    %v159 = vld [vmem:[%s5 + $0x60] sm:$0xff]
    %v160 = vld [vmem:[%s5 + $0x68] sm:$0xff]
    %v161 = vld [vmem:[%s5 + $0x70] sm:$0xff]
    %v162 = vld [vmem:[%s5 + $0x78] sm:$0xff]
    %v163 = vld [vmem:[%s6] sm:$0x1]
    %v165 = vperm.slane %v163, 0
    %167 = vmatpush.msra.mxu0 %v162
    %168 = vmatpush.msra.mxu0 %v161
    %169 = vmatpush.msra.mxu0 %v160
    %170 = vmatpush.msra.mxu0 %v159
    %171 = vmatpush.msra.mxu0 %v158
    %172 = vmatpush.msra.mxu0 %v157
    %173 = vmatpush.msra.mxu0 %v156
    %174 = vmatpush.msra.mxu0 %v155
    %175 = vmatpush.msra.mxu0 %v154
    %176 = vmatpush.msra.mxu0 %v153
    %177 = vmatpush.msra.mxu0 %v152
    %178 = vmatpush.msra.mxu0 %v151
    %179 = vmatpush.msra.mxu0 %v150
    %180 = vmatpush.msra.mxu0 %v149
    %181 = vmatpush.msra.mxu0 %v148
    %182 = vmatpush.msra.mxu0 %v147
    %183 = vmatmul.f32.gmra.mxu0 %v146
    %v184 = vpop.f32.mrf.mxu0
    %v185 = vadd.f32 %v165, %v184
    %186 = vdwg.mxu0
    %vm187 = vcmask 31744
    %188 = vst.msk [vmem:[%s7] sm:$0xff] %vm187, %v185
    // Predicated region
    $region34: #{tpu_custom_call.1} parent=1 // pred_check
      _
    $region35: #{tpu_custom_call.1} parent=1 // pred_check_branch
      %190 = sbr.rel (0) target = $region37
    $region36: #{tpu_custom_call.1} parent=1 // pred_region
      _
    $region37: #{tpu_custom_call.1} parent=1 // pred_fallthru
      _
    // Predicated region
    $region38: #{tpu_custom_call.1} parent=1 // pred_check
      _
    $region39: #{tpu_custom_call.1} parent=1 // pred_check_branch
      %192 = sbr.rel (0) target = $region41
    $region40: #{tpu_custom_call.1} parent=1 // pred_region
      _
    $region41: #{tpu_custom_call.1} parent=1 // pred_fallthru
      _
    %193 = vsyncpa [#allocation3], 1

</llo_original>
